<compile_context>
chip_gen: v5e
topology: v5e:2x2
jax: 0.10.0
libtpu: 0.0.40
codegen_flags: <defaults>
</compile_context>

<pallas_src>
import functools

import jax
import jax.numpy as jnp
from jax.experimental import pallas as pl
from jax.experimental.pallas import tpu as pltpu

LANE = 128      # lane width: pad feature dims to multiples of this
SUBLANE = 8     # sublane width: pad node / graph counts to multiples of this


# ---------------------------------------------------------------------------
# Fused Pallas kernel
# ---------------------------------------------------------------------------

def _vmem_spec():
    return pl.BlockSpec(memory_space=pltpu.MemorySpace.VMEM)


def _fused_gcn_kernel(*refs, n_gnn, n_ff, cast_bf16):
    """refs = (a_norm, x, mask, [gnn: w, b]*, [ff: w, b, scale, shift]*, out)."""
    a_ref, x_ref, mask_ref = refs[0], refs[1], refs[2]
    o_ref = refs[-1]
    params = refs[3:-1]

    def mm(v):
        # bf16 operands for the MXU (v6e/v7x native); accumulation stays f32.
        return v.astype(jnp.bfloat16) if cast_bf16 else v

    a_mm = mm(a_ref[...])                       # adjacency loaded once, reused per layer
    h = x_ref[...]                              # [Np, F] f32

    idx = 0
    for _ in range(n_gnn):
        w = params[idx][...]
        b = params[idx + 1][...]
        idx += 2
        xw = jnp.dot(mm(h), mm(w), preferred_element_type=jnp.float32)       # [Np, Fo]
        h = jnp.dot(a_mm, mm(xw), preferred_element_type=jnp.float32) + b    # aggregate
        h = jnp.maximum(h, 0.0)                                              # ReLU (f32)

    # global max pool: single broadcasted reduction + one full-block result.
    # mask: [Np, Gp] 0/1 membership; padded nodes have all-zero rows, padded graph
    # columns produce sentinel rows that the wrapper slices off.
    mask = mask_ref[...]
    masked = jnp.where(mask[:, :, None] > 0.0, h[:, None, :], jnp.float32(-1e30))
    h = jnp.max(masked, axis=0)                 # [Gp, F]

    for _ in range(n_ff):
        w = params[idx][...]
        b = params[idx + 1][...]
        s = params[idx + 2][...]
        t = params[idx + 3][...]
        idx += 4
        z = jnp.dot(mm(h), mm(w), preferred_element_type=jnp.float32) + b
        z = jnp.maximum(z, 0.0)                 # ReLU
        h = z * s + t                           # eval-mode BatchNorm folded to scale/shift

    o_ref[...] = h                              # single lane-dense, unmasked store


# ---------------------------------------------------------------------------
# Wrapper: padding to lane/sublane-aligned shapes + single pallas_call
# ---------------------------------------------------------------------------

def _round_up(v, m):
    return ((v + m - 1) // m) * m


def _pad2d(arr, rows, cols, fill=0.0):
    r, c = arr.shape
    return jnp.pad(arr, ((0, rows - r), (0, cols - c)), constant_values=fill)


def gcn_encoder_forward(x, a_norm, mask_ng, params, *, cast_bf16=True):
    n, f_in = x.shape
    g = mask_ng.shape[1]
    n_p = _round_up(n, SUBLANE)
    g_p = _round_up(g, SUBLANE)

    inputs = [
        _pad2d(a_norm, n_p, n_p),
        _pad2d(x, n_p, _round_up(f_in, LANE)),
        _pad2d(mask_ng, n_p, g_p),
    ]
    for (w, b) in params["gnn"]:
        fi, fo = w.shape
        inputs.append(_pad2d(w, _round_up(fi, LANE), _round_up(fo, LANE)))
        inputs.append(_pad2d(b, 1, _round_up(fo, LANE)))
    for (w, b, s, t) in params["ff"]:
        fi, fo = w.shape
        fo_p = _round_up(fo, LANE)
        inputs.append(_pad2d(w, _round_up(fi, LANE), fo_p))
        inputs.append(_pad2d(b, 1, fo_p))
        inputs.append(_pad2d(s, 1, fo_p, fill=1.0))   # padded cols: 0*1 + 0 = 0
        inputs.append(_pad2d(t, 1, fo_p))

    f_out = params["ff"][-1][0].shape[1]
    f_out_p = _round_up(f_out, LANE)

    kernel = functools.partial(
        _fused_gcn_kernel,
        n_gnn=len(params["gnn"]),
        n_ff=len(params["ff"]),
        cast_bf16=cast_bf16,
    )
    out_p = pl.pallas_call(
        kernel,
        out_shape=jax.ShapeDtypeStruct((g_p, f_out_p), jnp.float32),
        in_specs=[_vmem_spec()] * len(inputs),
        out_specs=_vmem_spec(),
    )(*inputs)
    return out_p[:g, :f_out]


# ---------------------------------------------------------------------------
# JAX glue: densified/normalized adjacency, batch mask, params, reference
# ---------------------------------------------------------------------------

def normalized_adjacency(edge_index, num_nodes):
    """Dense D^-1/2 (A + I) D^-1/2, matching PyG GCNConv(add_self_loops=True)."""
    src = edge_index[0]
    dst = edge_index[1]
    loop = jnp.arange(num_nodes, dtype=edge_index.dtype)
    src = jnp.concatenate([src, loop])
    dst = jnp.concatenate([dst, loop])
    a = jnp.zeros((num_nodes, num_nodes), jnp.float32).at[dst, src].add(1.0)
    deg = jnp.sum(a, axis=1)
    dinv = 1.0 / jnp.sqrt(jnp.maximum(deg, 1e-12))
    return a * dinv[:, None] * dinv[None, :]


def build_batch_mask(batch, num_graphs):
    return (batch[:, None] == jnp.arange(num_graphs)[None, :]).astype(jnp.float32)


def reference_forward(x, a_norm, batch, num_graphs, params):
    for (w, b) in params["gnn"]:
        x = jnp.maximum(a_norm @ (x @ w) + b, 0.0)
    pooled = jnp.stack([
        jnp.max(jnp.where((batch == g)[:, None], x, -1e30), axis=0)
        for g in range(num_graphs)
    ])
    x = pooled
    for (w, b, s, t) in params["ff"]:
        x = jnp.maximum(x @ w + b, 0.0) * s + t
    return x


def init_params(key, input_size, gnn_dims, ff_dims, batch_norm, bn_eps=1e-5):
    params = {"gnn": [], "ff": []}
    dims_in = input_size
    for d in gnn_dims:
        key, k1, k2 = jax.random.split(key, 3)
        w = 0.1 * jax.random.normal(k1, (dims_in, d), jnp.float32)
        b = 0.1 * jax.random.normal(k2, (1, d), jnp.float32)
        params["gnn"].append((w, b))
        dims_in = d
    for d in ff_dims:
        key, k1, k2 = jax.random.split(key, 3)
        w = 0.1 * jax.random.normal(k1, (dims_in, d), jnp.float32)   # stored [in, out]
        b = 0.1 * jax.random.normal(k2, (1, d), jnp.float32)
        if batch_norm:
            gamma = jnp.ones((1, d), jnp.float32)        # fresh BatchNorm1d init
            beta = jnp.zeros((1, d), jnp.float32)
            running_mean = jnp.zeros((1, d), jnp.float32)
            running_var = jnp.ones((1, d), jnp.float32)
            scale = gamma / jnp.sqrt(running_var + bn_eps)
            shift = beta - running_mean * scale
        else:
            scale = jnp.ones((1, d), jnp.float32)
            shift = jnp.zeros((1, d), jnp.float32)
        params["ff"].append((w, b, scale, shift))
        dims_in = d
    return params


# ---------------------------------------------------------------------------
# Main
# ---------------------------------------------------------------------------

if __name__ == "__main__":
    config = {
        "batch_norm": True,
        "gnn_num_layers": 2, "gnn_0": 32, "gnn_1": 32,
        "ff_num_layers": 2, "ff_0": 32, "ff_1": 16,
        "gnn_dropout": 0.1,
    }
    input_size = 16              # atomic feature size
    gnn_dims = [config[f"gnn_{i}"] for i in range(config["gnn_num_layers"])]
    ff_dims = [config[f"ff_{i}"] for i in range(config["ff_num_layers"])]

    # synthetic batched graph: 2 molecules, 20 atoms total
    num_graphs = 2
    nodes_per_graph = [12, 8]
    num_nodes = sum(nodes_per_graph)

    key = jax.random.PRNGKey(0)
    key, kx = jax.random.split(key)
    x = jax.random.normal(kx, (num_nodes, input_size), jnp.float32)

    # chain edges (both directions) within each graph
    edges = []
    offset = 0
    for n in nodes_per_graph:
        for a in range(offset, offset + n - 1):
            edges.append((a, a + 1))
            edges.append((a + 1, a))
        offset += n
    edge_index = jnp.array(edges, dtype=jnp.int32).T            # [2, E]
    batch = jnp.concatenate([
        jnp.full((n,), g, jnp.int32) for g, n in enumerate(nodes_per_graph)
    ])                                                           # [N]

    a_norm = normalized_adjacency(edge_index, num_nodes)         # [N, N]
    mask_ng = build_batch_mask(batch, num_graphs)                # [N, G]

    params = init_params(key, input_size, gnn_dims, ff_dims, config["batch_norm"])
    ref = reference_forward(x, a_norm, batch, num_graphs, params)

    # f32 path: tight numerical check vs pure-JAX reference.
    out_f32 = jax.block_until_ready(
        gcn_encoder_forward(x, a_norm, mask_ng, params, cast_bf16=False))
    assert out_f32.shape == (num_graphs, ff_dims[-1]), out_f32.shape
    assert jnp.allclose(out_f32, ref, atol=1e-4, rtol=1e-4), "f32 mismatch vs reference"

    # bf16 MXU path (default / performance): looser tolerance.
    out_bf16 = jax.block_until_ready(
        gcn_encoder_forward(x, a_norm, mask_ng, params, cast_bf16=True))
    assert out_bf16.shape == (num_graphs, ff_dims[-1]), out_bf16.shape
    assert jnp.allclose(out_bf16, ref, atol=5e-2, rtol=5e-2), "bf16 mismatch vs reference"

    print("KERNEL_OK")
</pallas_src>

<mosaic_0001>
module attributes {stable_mosaic.version = 11 : i64} {
  func.func @_fused_gcn_kernel(%arg0: memref<24x24xf32, #tpu.memory_space<vmem>>, %arg1: memref<24x128xf32, #tpu.memory_space<vmem>>, %arg2: memref<24x8xf32, #tpu.memory_space<vmem>>, %arg3: memref<128x128xf32, #tpu.memory_space<vmem>>, %arg4: memref<1x128xf32, #tpu.memory_space<vmem>>, %arg5: memref<128x128xf32, #tpu.memory_space<vmem>>, %arg6: memref<1x128xf32, #tpu.memory_space<vmem>>, %arg7: memref<128x128xf32, #tpu.memory_space<vmem>>, %arg8: memref<1x128xf32, #tpu.memory_space<vmem>>, %arg9: memref<1x128xf32, #tpu.memory_space<vmem>>, %arg10: memref<1x128xf32, #tpu.memory_space<vmem>>, %arg11: memref<128x128xf32, #tpu.memory_space<vmem>>, %arg12: memref<1x128xf32, #tpu.memory_space<vmem>>, %arg13: memref<1x128xf32, #tpu.memory_space<vmem>>, %arg14: memref<1x128xf32, #tpu.memory_space<vmem>>, %arg15: memref<8x128xf32, #tpu.memory_space<vmem>>) attributes {dimension_semantics = [], scalar_prefetch = 0 : i64, scratch_operands = 0 : i64, tpu.core_type = #tpu.core_type<tc>} {
    %c0 = arith.constant 0 : index
    %c0_0 = arith.constant 0 : index
    %0 = vector.load %arg0[%c0, %c0_0] : memref<24x24xf32, #tpu.memory_space<vmem>>, vector<24x24xf32>
    %c0_1 = arith.constant 0 : index
    %c0_2 = arith.constant 0 : index
    %1 = vector.load %arg1[%c0_1, %c0_2] : memref<24x128xf32, #tpu.memory_space<vmem>>, vector<24x128xf32>
    %c0_3 = arith.constant 0 : index
    %c0_4 = arith.constant 0 : index
    %2 = vector.load %arg3[%c0_3, %c0_4] : memref<128x128xf32, #tpu.memory_space<vmem>>, vector<128x128xf32>
    %c0_5 = arith.constant 0 : index
    %c0_6 = arith.constant 0 : index
    %3 = vector.load %arg4[%c0_5, %c0_6] : memref<1x128xf32, #tpu.memory_space<vmem>>, vector<1x128xf32>
    %cst = arith.constant dense<0.000000e+00> : vector<24x128xf32>
    %4 = tpu.matmul %1, %2, %cst {dimension_numbers = #tpu.dot_dimension_numbers<[1], [0], [0], [1], [0, 0, 1, 1], [], []>} : vector<24x128xf32>, vector<128x128xf32>, vector<24x128xf32> -> vector<24x128xf32>
    %cst_7 = arith.constant dense<0.000000e+00> : vector<24x128xf32>
    %5 = tpu.matmul %0, %4, %cst_7 {dimension_numbers = #tpu.dot_dimension_numbers<[1], [0], [0], [1], [0, 0, 1, 1], [], []>} : vector<24x24xf32>, vector<24x128xf32>, vector<24x128xf32> -> vector<24x128xf32>
    %6 = vector.broadcast %3 : vector<1x128xf32> to vector<24x128xf32>
    %7 = arith.addf %5, %6 : vector<24x128xf32>
    %cst_8 = arith.constant 0.000000e+00 : f32
    %8 = vector.broadcast %cst_8 : f32 to vector<24x128xf32>
    %9 = arith.maximumf %7, %8 : vector<24x128xf32>
    %c0_9 = arith.constant 0 : index
    %c0_10 = arith.constant 0 : index
    %10 = vector.load %arg5[%c0_9, %c0_10] : memref<128x128xf32, #tpu.memory_space<vmem>>, vector<128x128xf32>
    %c0_11 = arith.constant 0 : index
    %c0_12 = arith.constant 0 : index
    %11 = vector.load %arg6[%c0_11, %c0_12] : memref<1x128xf32, #tpu.memory_space<vmem>>, vector<1x128xf32>
    %cst_13 = arith.constant dense<0.000000e+00> : vector<24x128xf32>
    %12 = tpu.matmul %9, %10, %cst_13 {dimension_numbers = #tpu.dot_dimension_numbers<[1], [0], [0], [1], [0, 0, 1, 1], [], []>} : vector<24x128xf32>, vector<128x128xf32>, vector<24x128xf32> -> vector<24x128xf32>
    %cst_14 = arith.constant dense<0.000000e+00> : vector<24x128xf32>
    %13 = tpu.matmul %0, %12, %cst_14 {dimension_numbers = #tpu.dot_dimension_numbers<[1], [0], [0], [1], [0, 0, 1, 1], [], []>} : vector<24x24xf32>, vector<24x128xf32>, vector<24x128xf32> -> vector<24x128xf32>
    %14 = vector.broadcast %11 : vector<1x128xf32> to vector<24x128xf32>
    %15 = arith.addf %13, %14 : vector<24x128xf32>
    %cst_15 = arith.constant 0.000000e+00 : f32
    %16 = vector.broadcast %cst_15 : f32 to vector<24x128xf32>
    %17 = arith.maximumf %15, %16 : vector<24x128xf32>
    %c0_16 = arith.constant 0 : index
    %c0_17 = arith.constant 0 : index
    %18 = vector.load %arg2[%c0_16, %c0_17] : memref<24x8xf32, #tpu.memory_space<vmem>>, vector<24x8xf32>
    %19 = vector.shape_cast %18 : vector<24x8xf32> to vector<24x8x1xf32>
    %cst_18 = arith.constant 0.000000e+00 : f32
    %20 = vector.broadcast %cst_18 : f32 to vector<24x8x1xf32>
    %21 = arith.cmpf ogt, %19, %20 : vector<24x8x1xf32>
    %22 = vector.shape_cast %17 : vector<24x128xf32> to vector<24x1x128xf32>
    %cst_19 = arith.constant -1.000000e+30 : f32
    %23 = vector.shape_cast %21 : vector<24x8x1xi1> to vector<24x8x1xi1>
    %24 = vector.broadcast %23 : vector<24x8x1xi1> to vector<24x8x128xi1>
    %25 = vector.shape_cast %22 : vector<24x1x128xf32> to vector<24x1x128xf32>
    %26 = vector.broadcast %25 : vector<24x1x128xf32> to vector<24x8x128xf32>
    %27 = vector.broadcast %cst_19 : f32 to vector<24x8x128xf32>
    %28 = arith.select %24, %26, %27 : vector<24x8x128xi1>, vector<24x8x128xf32>
    %cst_20 = arith.constant dense<0xFF800000> : vector<8x128xf32>
    %29 = vector.multi_reduction <maximumf>, %28, %cst_20 [0] : vector<24x8x128xf32> to vector<8x128xf32>
    %c0_21 = arith.constant 0 : index
    %c0_22 = arith.constant 0 : index
    %30 = vector.load %arg7[%c0_21, %c0_22] : memref<128x128xf32, #tpu.memory_space<vmem>>, vector<128x128xf32>
    %c0_23 = arith.constant 0 : index
    %c0_24 = arith.constant 0 : index
    %31 = vector.load %arg8[%c0_23, %c0_24] : memref<1x128xf32, #tpu.memory_space<vmem>>, vector<1x128xf32>
    %c0_25 = arith.constant 0 : index
    %c0_26 = arith.constant 0 : index
    %32 = vector.load %arg9[%c0_25, %c0_26] : memref<1x128xf32, #tpu.memory_space<vmem>>, vector<1x128xf32>
    %c0_27 = arith.constant 0 : index
    %c0_28 = arith.constant 0 : index
    %33 = vector.load %arg10[%c0_27, %c0_28] : memref<1x128xf32, #tpu.memory_space<vmem>>, vector<1x128xf32>
    %cst_29 = arith.constant dense<0.000000e+00> : vector<8x128xf32>
    %34 = tpu.matmul %29, %30, %cst_29 {dimension_numbers = #tpu.dot_dimension_numbers<[1], [0], [0], [1], [0, 0, 1, 1], [], []>} : vector<8x128xf32>, vector<128x128xf32>, vector<8x128xf32> -> vector<8x128xf32>
    %35 = vector.broadcast %31 : vector<1x128xf32> to vector<8x128xf32>
    %36 = arith.addf %34, %35 : vector<8x128xf32>
    %cst_30 = arith.constant 0.000000e+00 : f32
    %37 = vector.broadcast %cst_30 : f32 to vector<8x128xf32>
    %38 = arith.maximumf %36, %37 : vector<8x128xf32>
    %39 = vector.broadcast %32 : vector<1x128xf32> to vector<8x128xf32>
    %40 = arith.mulf %38, %39 : vector<8x128xf32>
    %41 = vector.broadcast %33 : vector<1x128xf32> to vector<8x128xf32>
    %42 = arith.addf %40, %41 : vector<8x128xf32>
    %c0_31 = arith.constant 0 : index
    %c0_32 = arith.constant 0 : index
    %43 = vector.load %arg11[%c0_31, %c0_32] : memref<128x128xf32, #tpu.memory_space<vmem>>, vector<128x128xf32>
    %c0_33 = arith.constant 0 : index
    %c0_34 = arith.constant 0 : index
    %44 = vector.load %arg12[%c0_33, %c0_34] : memref<1x128xf32, #tpu.memory_space<vmem>>, vector<1x128xf32>
    %c0_35 = arith.constant 0 : index
    %c0_36 = arith.constant 0 : index
    %45 = vector.load %arg13[%c0_35, %c0_36] : memref<1x128xf32, #tpu.memory_space<vmem>>, vector<1x128xf32>
    %c0_37 = arith.constant 0 : index
    %c0_38 = arith.constant 0 : index
    %46 = vector.load %arg14[%c0_37, %c0_38] : memref<1x128xf32, #tpu.memory_space<vmem>>, vector<1x128xf32>
    %cst_39 = arith.constant dense<0.000000e+00> : vector<8x128xf32>
    %47 = tpu.matmul %42, %43, %cst_39 {dimension_numbers = #tpu.dot_dimension_numbers<[1], [0], [0], [1], [0, 0, 1, 1], [], []>} : vector<8x128xf32>, vector<128x128xf32>, vector<8x128xf32> -> vector<8x128xf32>
    %48 = vector.broadcast %44 : vector<1x128xf32> to vector<8x128xf32>
    %49 = arith.addf %47, %48 : vector<8x128xf32>
    %cst_40 = arith.constant 0.000000e+00 : f32
    %50 = vector.broadcast %cst_40 : f32 to vector<8x128xf32>
    %51 = arith.maximumf %49, %50 : vector<8x128xf32>
    %52 = vector.broadcast %45 : vector<1x128xf32> to vector<8x128xf32>
    %53 = arith.mulf %51, %52 : vector<8x128xf32>
    %54 = vector.broadcast %46 : vector<1x128xf32> to vector<8x128xf32>
    %55 = arith.addf %53, %54 : vector<8x128xf32>
    %c0_41 = arith.constant 0 : index
    %c0_42 = arith.constant 0 : index
    %56 = vector.load %arg15[%c0_41, %c0_42] : memref<8x128xf32, #tpu.memory_space<vmem>>, vector<8x128xf32>
    tpu.vector_store %arg15[%c0_41, %c0_42], %55 {strides = array<i32>} : memref<8x128xf32, #tpu.memory_space<vmem>>, vector<8x128xf32>,
    return
  }
}

</mosaic_0001>

<llo_original>
// kernel: tpu_custom_call.1
$region0: #{tpu_custom_call.1}
  #allocation0 [shape = 'u32[]', space=smem, size = 0x4, offset = 0x4, fixed_abs, tag = 'smem constant byte address 0x4 - core index']
  #allocation1 [shape = 'u32[72,128]{1,0:T(1,128)}', space=vmem, size = 0x9000, scoped, tag = 'internal scratch']
  %s0 = inlined_call_operand.vmem [shape: f32[24,24], index: 0, kind: input, shape index: {}]
  %s1 = inlined_call_operand.hbm [shape: f32[24,128], index: 1, kind: input, shape index: {}]
  %s2 = inlined_call_operand.vmem [shape: f32[24,8], index: 2, kind: input, shape index: {}]
  %s3 = inlined_call_operand.hbm [shape: f32[128,128], index: 3, kind: input, shape index: {}]
  %s4 = inlined_call_operand.vmem [shape: f32[1,128], index: 4, kind: input, shape index: {}]
  %s5 = inlined_call_operand.hbm [shape: f32[128,128], index: 5, kind: input, shape index: {}]
  %s6 = inlined_call_operand.vmem [shape: f32[1,128], index: 6, kind: input, shape index: {}]
  %s7 = inlined_call_operand.hbm [shape: f32[128,128], index: 7, kind: input, shape index: {}]
  %s8 = inlined_call_operand.vmem [shape: f32[1,128], index: 8, kind: input, shape index: {}]
  %s9 = inlined_call_operand.vmem [shape: f32[1,128], index: 9, kind: input, shape index: {}]
  %s10 = inlined_call_operand.vmem [shape: f32[1,128], index: 10, kind: input, shape index: {}]
  %s11 = inlined_call_operand.hbm [shape: f32[128,128], index: 11, kind: input, shape index: {}]
  %s12 = inlined_call_operand.vmem [shape: f32[1,128], index: 12, kind: input, shape index: {}]
  %s13 = inlined_call_operand.vmem [shape: f32[1,128], index: 13, kind: input, shape index: {}]
  %s14 = inlined_call_operand.vmem [shape: f32[1,128], index: 14, kind: input, shape index: {}]
  %s15 = inlined_call_operand.hbm [shape: f32[8,128], index: 15, kind: output, shape index: {}]
  %s16 = sld [smem:[#allocation0]]
  $region90: #{tpu_custom_call.1} parent=0
    _
  %s18 = ssub.s32 1, %s16
  %s19 = scalar_select 0, %s18, %s16
  $region1: #{tpu_custom_call.1} parent=0
    #allocation2 [shape = 'u8[12288]{0}', space=vmem, size = 0x3000, scoped, tag = 'input window, operand 1, single buffered']
    #allocation3 [shape = 's32[1]{0}', space=sflag, size = 0x4, scoped, tag = 'scoped memory for tpu_custom_call.1']
    #allocation4 [shape = 's32[1]{0}', space=sflag, size = 0x4, scoped, tag = 'scoped memory for tpu_custom_call.1']
    #allocation5 [shape = 'u8[65536]{0}', space=vmem, size = 0x10000, scoped, tag = 'input window, operand 3, single buffered']
    #allocation6 [shape = 's32[1]{0}', space=sflag, size = 0x4, scoped, tag = 'scoped memory for tpu_custom_call.1']
    #allocation7 [shape = 'u8[65536]{0}', space=vmem, size = 0x10000, scoped, tag = 'input window, operand 5, single buffered']
    #allocation8 [shape = 'u8[65536]{0}', space=vmem, size = 0x10000, scoped, tag = 'input window, operand 7, single buffered']
    #allocation9 [shape = 's32[1]{0}', space=sflag, size = 0x4, scoped, tag = 'scoped memory for tpu_custom_call.1']
    #allocation10 [shape = 'u8[65536]{0}', space=vmem, size = 0x10000, scoped, tag = 'input window, operand 11, single buffered']
    #allocation11 [shape = 'u8[4096]{0}', space=vmem, size = 0x1000, scoped, tag = 'output window, operand 0, single buffered']
    %20 = vsyncpa [#allocation3], 0
    %21 = vsyncpa [#allocation6], 0
    %22 = vsyncpa [#allocation9], 0
    %23 = vsyncpa [#allocation4], 0
    // Predicated region
    $region2: #{tpu_custom_call.1} parent=1 // pred_check
      _
    $region3: #{tpu_custom_call.1} parent=1 // pred_check_branch
      %25 = sbr.rel (0) target = $region5
    $region4: #{tpu_custom_call.1} parent=1 // pred_region
      _
    $region5: #{tpu_custom_call.1} parent=1 // pred_fallthru
      _
    // Predicated region
    $region6: #{tpu_custom_call.1} parent=1 // pred_check
      _
    $region7: #{tpu_custom_call.1} parent=1 // pred_check_branch
      %27 = sbr.rel (0) target = $region9
    $region8: #{tpu_custom_call.1} parent=1 // pred_region
      %29 = vsyncadd [#allocation3], 0
      %s30 = sshll.u32 %s1, 4
      %s31 = int_to_ptr.hbm [resolvable:$true] %s30
      %s32 = sshll.u32 [#allocation2], 4
      %s33 = int_to_ptr.vmem [resolvable:$true] %s32
      %38 = dma.hbm_to_vmem [thread:$0]  %s31, 384, %s33, [#allocation3], 128, 128, 8
    $region9: #{tpu_custom_call.1} parent=1 // pred_fallthru
      _
    // Predicated region
    $region10: #{tpu_custom_call.1} parent=1 // pred_check
      _
    $region11: #{tpu_custom_call.1} parent=1 // pred_check_branch
      %40 = sbr.rel (0) target = $region13
    $region12: #{tpu_custom_call.1} parent=1 // pred_region
      _
    $region13: #{tpu_custom_call.1} parent=1 // pred_fallthru
      _
    // Predicated region
    $region14: #{tpu_custom_call.1} parent=1 // pred_check
      _
    $region15: #{tpu_custom_call.1} parent=1 // pred_check_branch
      %42 = sbr.rel (0) target = $region17
    $region16: #{tpu_custom_call.1} parent=1 // pred_region
      %44 = vsyncadd [#allocation6], 0
      %s45 = sshll.u32 %s3, 4
      %s46 = int_to_ptr.hbm [resolvable:$true] %s45
      %s47 = sshll.u32 [#allocation5], 4
      %s48 = int_to_ptr.vmem [resolvable:$true] %s47
      %53 = dma.hbm_to_vmem [thread:$0]  %s46, 2048, %s48, [#allocation6], 128, 128, 8
    $region17: #{tpu_custom_call.1} parent=1 // pred_fallthru
      _
    // Predicated region
    $region18: #{tpu_custom_call.1} parent=1 // pred_check
      _
    $region19: #{tpu_custom_call.1} parent=1 // pred_check_branch
      %55 = sbr.rel (0) target = $region21
    $region20: #{tpu_custom_call.1} parent=1 // pred_region
      _
    $region21: #{tpu_custom_call.1} parent=1 // pred_fallthru
      _
    // Predicated region
    $region22: #{tpu_custom_call.1} parent=1 // pred_check
      _
    $region23: #{tpu_custom_call.1} parent=1 // pred_check_branch
      %57 = sbr.rel (0) target = $region25
    $region24: #{tpu_custom_call.1} parent=1 // pred_region
      %59 = vsyncadd [#allocation6], 0
      %s60 = sshll.u32 %s5, 4
      %s61 = int_to_ptr.hbm [resolvable:$true] %s60
      %s62 = sshll.u32 [#allocation7], 4
      %s63 = int_to_ptr.vmem [resolvable:$true] %s62
      %68 = dma.hbm_to_vmem [thread:$0]  %s61, 2048, %s63, [#allocation6], 128, 128, 8
    $region25: #{tpu_custom_call.1} parent=1 // pred_fallthru
      _
    // Predicated region
    $region26: #{tpu_custom_call.1} parent=1 // pred_check
      _
    $region27: #{tpu_custom_call.1} parent=1 // pred_check_branch
      %70 = sbr.rel (0) target = $region29
    $region28: #{tpu_custom_call.1} parent=1 // pred_region
      _
    $region29: #{tpu_custom_call.1} parent=1 // pred_fallthru
      _
    // Predicated region
    $region30: #{tpu_custom_call.1} parent=1 // pred_check
      _
    $region31: #{tpu_custom_call.1} parent=1 // pred_check_branch
      %72 = sbr.rel (0) target = $region33
    $region32: #{tpu_custom_call.1} parent=1 // pred_region
      %74 = vsyncadd [#allocation9], 0
      %s75 = sshll.u32 %s7, 4
      %s76 = int_to_ptr.hbm [resolvable:$true] %s75
      %s77 = sshll.u32 [#allocation8], 4
      %s78 = int_to_ptr.vmem [resolvable:$true] %s77
      %83 = dma.hbm_to_vmem [thread:$0]  %s76, 2048, %s78, [#allocation9], 128, 128, 8
    $region33: #{tpu_custom_call.1} parent=1 // pred_fallthru
      _
    // Predicated region
    $region34: #{tpu_custom_call.1} parent=1 // pred_check
      _
    $region35: #{tpu_custom_call.1} parent=1 // pred_check_branch
      %85 = sbr.rel (0) target = $region37
    $region36: #{tpu_custom_call.1} parent=1 // pred_region
      _
    $region37: #{tpu_custom_call.1} parent=1 // pred_fallthru
      _
    // Predicated region
    $region38: #{tpu_custom_call.1} parent=1 // pred_check
      _
    $region39: #{tpu_custom_call.1} parent=1 // pred_check_branch
      %87 = sbr.rel (0) target = $region41
    $region40: #{tpu_custom_call.1} parent=1 // pred_region
      _
    $region41: #{tpu_custom_call.1} parent=1 // pred_fallthru
      _
    // Predicated region
    $region42: #{tpu_custom_call.1} parent=1 // pred_check
      _
    $region43: #{tpu_custom_call.1} parent=1 // pred_check_branch
      %89 = sbr.rel (0) target = $region45
    $region44: #{tpu_custom_call.1} parent=1 // pred_region
      _
    $region45: #{tpu_custom_call.1} parent=1 // pred_fallthru
      _
    // Predicated region
    $region46: #{tpu_custom_call.1} parent=1 // pred_check
      _
    $region47: #{tpu_custom_call.1} parent=1 // pred_check_branch
      %91 = sbr.rel (0) target = $region49
    $region48: #{tpu_custom_call.1} parent=1 // pred_region
      %93 = vsyncadd [#allocation9], 0
      %s94 = sshll.u32 %s11, 4
      %s95 = int_to_ptr.hbm [resolvable:$true] %s94
      %s96 = sshll.u32 [#allocation10], 4
      %s97 = int_to_ptr.vmem [resolvable:$true] %s96
      %102 = dma.hbm_to_vmem [thread:$0]  %s95, 2048, %s97, [#allocation9], 128, 128, 8
    $region49: #{tpu_custom_call.1} parent=1 // pred_fallthru
      _
    // Predicated region
    $region50: #{tpu_custom_call.1} parent=1 // pred_check
      _
    $region51: #{tpu_custom_call.1} parent=1 // pred_check_branch
      %104 = sbr.rel (0) target = $region53
    $region52: #{tpu_custom_call.1} parent=1 // pred_region
      _
    $region53: #{tpu_custom_call.1} parent=1 // pred_fallthru
      _
    // Predicated region
    $region54: #{tpu_custom_call.1} parent=1 // pred_check
      _
    $region55: #{tpu_custom_call.1} parent=1 // pred_check_branch
      %106 = sbr.rel (0) target = $region57
    $region56: #{tpu_custom_call.1} parent=1 // pred_region
      _
    $region57: #{tpu_custom_call.1} parent=1 // pred_fallthru
      _
    // Predicated region
    $region58: #{tpu_custom_call.1} parent=1 // pred_check
      _
    $region59: #{tpu_custom_call.1} parent=1 // pred_check_branch
      %108 = sbr.rel (0) target = $region61
    $region60: #{tpu_custom_call.1} parent=1 // pred_region
      _
    $region61: #{tpu_custom_call.1} parent=1 // pred_fallthru
      _
    // Predicated region
    $region62: #{tpu_custom_call.1} parent=1 // pred_check
      _
    $region63: #{tpu_custom_call.1} parent=1 // pred_check_branch
      %110 = sbr.rel (0) target = $region65
    $region64: #{tpu_custom_call.1} parent=1 // pred_region
      %112 = dma.done [#allocation3], 384
    $region65: #{tpu_custom_call.1} parent=1 // pred_fallthru
      _
    // Predicated region
    $region66: #{tpu_custom_call.1} parent=1 // pred_check
      _
    $region67: #{tpu_custom_call.1} parent=1 // pred_check_branch
      %114 = sbr.rel (0) target = $region69
    $region68: #{tpu_custom_call.1} parent=1 // pred_region
      %116 = dma.done [#allocation6], 2048
    $region69: #{tpu_custom_call.1} parent=1 // pred_fallthru
      _
    // Predicated region
    $region70: #{tpu_custom_call.1} parent=1 // pred_check
      _
    $region71: #{tpu_custom_call.1} parent=1 // pred_check_branch
      %118 = sbr.rel (0) target = $region73
    $region72: #{tpu_custom_call.1} parent=1 // pred_region
      %120 = dma.done [#allocation6], 2048
    $region73: #{tpu_custom_call.1} parent=1 // pred_fallthru
      _
    // Predicated region
    $region74: #{tpu_custom_call.1} parent=1 // pred_check
      _
    $region75: #{tpu_custom_call.1} parent=1 // pred_check_branch
      %122 = sbr.rel (0) target = $region77
    $region76: #{tpu_custom_call.1} parent=1 // pred_region
      %124 = dma.done [#allocation9], 2048
    $region77: #{tpu_custom_call.1} parent=1 // pred_fallthru
      _
    // Predicated region
    $region78: #{tpu_custom_call.1} parent=1 // pred_check
      _
    $region79: #{tpu_custom_call.1} parent=1 // pred_check_branch
      %126 = sbr.rel (0) target = $region81
    $region80: #{tpu_custom_call.1} parent=1 // pred_region
      %128 = dma.done [#allocation9], 2048
    $region81: #{tpu_custom_call.1} parent=1 // pred_fallthru
      _
    %v129 = vld [vmem:[%s0] sm:$0xff]
    %v130 = vld [vmem:[%s0 + $0x8] sm:$0xff]
    %v131 = vld [vmem:[%s0 + $0x10] sm:$0xff]
    %v132 = vld [vmem:[#allocation2] sm:$0xff]
    %v133 = vld [vmem:[#allocation2 + $0x8] sm:$0xff]
    %v134 = vld [vmem:[#allocation2 + $0x10] sm:$0xff]
    %v135 = vld [vmem:[#allocation5] sm:$0xff]
    %v136 = vld [vmem:[#allocation5 + $0x8] sm:$0xff]
    %v137 = vld [vmem:[#allocation5 + $0x10] sm:$0xff]
    %v138 = vld [vmem:[#allocation5 + $0x18] sm:$0xff]
    %v139 = vld [vmem:[#allocation5 + $0x20] sm:$0xff]
    %v140 = vld [vmem:[#allocation5 + $0x28] sm:$0xff]
    %v141 = vld [vmem:[#allocation5 + $0x30] sm:$0xff]
    %v142 = vld [vmem:[#allocation5 + $0x38] sm:$0xff]
    %v143 = vld [vmem:[#allocation5 + $0x40] sm:$0xff]
    %v144 = vld [vmem:[#allocation5 + $0x48] sm:$0xff]
    %v145 = vld [vmem:[#allocation5 + $0x50] sm:$0xff]
    %v146 = vld [vmem:[#allocation5 + $0x58] sm:$0xff]
    %v147 = vld [vmem:[#allocation5 + $0x60] sm:$0xff]
    %v148 = vld [vmem:[#allocation5 + $0x68] sm:$0xff]
    %v149 = vld [vmem:[#allocation5 + $0x70] sm:$0xff]
    %v150 = vld [vmem:[#allocation5 + $0x78] sm:$0xff]
    %v151 = vld [vmem:[%s4] sm:$0x1]
    %152 = vmatpush.msra.mxu0 %v150
    %153 = vmatpush.msra.mxu0 %v149
    %154 = vmatpush.msra.mxu0 %v148
    %155 = vmatpush.msra.mxu0 %v147
    %156 = vmatpush.msra.mxu0 %v146
    %157 = vmatpush.msra.mxu0 %v145
    %158 = vmatpush.msra.mxu0 %v144
    %159 = vmatpush.msra.mxu0 %v143
    %160 = vmatpush.msra.mxu0 %v142
    %161 = vmatpush.msra.mxu0 %v141
    %162 = vmatpush.msra.mxu0 %v140
    %163 = vmatpush.msra.mxu0 %v139
    %164 = vmatpush.msra.mxu0 %v138
    %165 = vmatpush.msra.mxu0 %v137
    %166 = vmatpush.msra.mxu0 %v136
    %167 = vmatpush.msra.mxu0 %v135
    %168 = vmatmul.f32.gmra.mxu0 %v132
    %v169 = vpop.f32.mrf.mxu0
    %v170 = vadd.f32 0.0, %v169
    %171 = vmatmul.f32.gmra.mxu0 %v133
    %v172 = vpop.f32.mrf.mxu0
    %v173 = vadd.f32 0.0, %v172
    %174 = vmatmul.f32.gmra.mxu0 %v134
    %v175 = vpop.f32.mrf.mxu0
    %v176 = vadd.f32 0.0, %v175
    %177 = vdwg.mxu0
    %v179 = vperm.slane %v151, 0
    %vm181 = vcmask 195584
    %v183 = vsel %vm181, %v129, 0
    %v186 = vsel %vm181, %v130, 0
    %v189 = vsel %vm181, %v131, 0
    %191 = vmatpush.msra.mxu0 0.0
    %192 = vmatpush.msra.mxu0 0.0
    %193 = vmatpush.msra.mxu0 0.0
    %194 = vmatpush.msra.mxu0 0.0
    %195 = vmatpush.msra.mxu0 0.0
    %196 = vmatpush.msra.mxu0 0.0
    %197 = vmatpush.msra.mxu0 0.0
    %198 = vmatpush.msra.mxu0 0.0
    %199 = vmatpush.msra.mxu0 0.0
    %200 = vmatpush.msra.mxu0 0.0
    %201 = vmatpush.msra.mxu0 0.0
    %202 = vmatpush.msra.mxu0 0.0
    %203 = vmatpush.msra.mxu0 0.0
    %204 = vmatpush.msra.mxu0 %v176
    %205 = vmatpush.msra.mxu0 %v173
    %206 = vmatpush.msra.mxu0 %v170
    %207 = vmatmul.f32.gmra.mxu0 %v183
    %v208 = vpop.f32.mrf.mxu0
    %v209 = vadd.f32 %v179, %v208
    %210 = vmatmul.f32.gmra.mxu0 %v186
    %v211 = vpop.f32.mrf.mxu0
    %v212 = vadd.f32 %v179, %v211
    %213 = vmatmul.f32.gmra.mxu0 %v189
    %v214 = vpop.f32.mrf.mxu0
    %v215 = vadd.f32 %v179, %v214
    %216 = vdwg.mxu0
    %v217 = vmax.f32 %v209, 0.0
    %v218 = vmax.f32 %v212, 0.0
    %v219 = vmax.f32 %v215, 0.0
    %v220 = vld [vmem:[#allocation7] sm:$0xff]
    %v221 = vld [vmem:[#allocation7 + $0x8] sm:$0xff]
    %v222 = vld [vmem:[#allocation7 + $0x10] sm:$0xff]
    %v223 = vld [vmem:[#allocation7 + $0x18] sm:$0xff]
    %v224 = vld [vmem:[#allocation7 + $0x20] sm:$0xff]
    %v225 = vld [vmem:[#allocation7 + $0x28] sm:$0xff]
    %v226 = vld [vmem:[#allocation7 + $0x30] sm:$0xff]
    %v227 = vld [vmem:[#allocation7 + $0x38] sm:$0xff]
    %v228 = vld [vmem:[#allocation7 + $0x40] sm:$0xff]
    %v229 = vld [vmem:[#allocation7 + $0x48] sm:$0xff]
    %v230 = vld [vmem:[#allocation7 + $0x50] sm:$0xff]
    %v231 = vld [vmem:[#allocation7 + $0x58] sm:$0xff]
    %v232 = vld [vmem:[#allocation7 + $0x60] sm:$0xff]
    %v233 = vld [vmem:[#allocation7 + $0x68] sm:$0xff]
    %v234 = vld [vmem:[#allocation7 + $0x70] sm:$0xff]
    %v235 = vld [vmem:[#allocation7 + $0x78] sm:$0xff]
    %v236 = vld [vmem:[%s6] sm:$0x1]
    %237 = vmatpush.msra.mxu0 %v235
    %238 = vmatpush.msra.mxu0 %v234
    %239 = vmatpush.msra.mxu0 %v233
    %240 = vmatpush.msra.mxu0 %v232
    %241 = vmatpush.msra.mxu0 %v231
    %242 = vmatpush.msra.mxu0 %v230
    %243 = vmatpush.msra.mxu0 %v229
    %244 = vmatpush.msra.mxu0 %v228
    %245 = vmatpush.msra.mxu0 %v227
    %246 = vmatpush.msra.mxu0 %v226
    %247 = vmatpush.msra.mxu0 %v225
    %248 = vmatpush.msra.mxu0 %v224
    %249 = vmatpush.msra.mxu0 %v223
    %250 = vmatpush.msra.mxu0 %v222
    %251 = vmatpush.msra.mxu0 %v221
    %252 = vmatpush.msra.mxu0 %v220
    %253 = vmatmul.f32.gmra.mxu0 %v217
    %v254 = vpop.f32.mrf.mxu0
    %v255 = vadd.f32 0.0, %v254
    %256 = vmatmul.f32.gmra.mxu0 %v218
    %v257 = vpop.f32.mrf.mxu0
    %v258 = vadd.f32 0.0, %v257
    %259 = vmatmul.f32.gmra.mxu0 %v219
    %v260 = vpop.f32.mrf.mxu0
    %v261 = vadd.f32 0.0, %v260
    %262 = vdwg.mxu0
    %v264 = vperm.slane %v236, 0
    %266 = vmatpush.msra.mxu0 0.0
    %267 = vmatpush.msra.mxu0 0.0
    %268 = vmatpush.msra.mxu0 0.0
    %269 = vmatpush.msra.mxu0 0.0
    %270 = vmatpush.msra.mxu0 0.0
    %271 = vmatpush.msra.mxu0 0.0
    %272 = vmatpush.msra.mxu0 0.0
    %273 = vmatpush.msra.mxu0 0.0
    %274 = vmatpush.msra.mxu0 0.0
    %275 = vmatpush.msra.mxu0 0.0
    %276 = vmatpush.msra.mxu0 0.0
    %277 = vmatpush.msra.mxu0 0.0
    %278 = vmatpush.msra.mxu0 0.0
    %279 = vmatpush.msra.mxu0 %v261
    %280 = vmatpush.msra.mxu0 %v258
    %281 = vmatpush.msra.mxu0 %v255
    %282 = vmatmul.f32.gmra.mxu0 %v183
    %v283 = vpop.f32.mrf.mxu0
    %v284 = vadd.f32 %v264, %v283
    %285 = vmatmul.f32.gmra.mxu0 %v186
    %v286 = vpop.f32.mrf.mxu0
    %v287 = vadd.f32 %v264, %v286
    %288 = vmatmul.f32.gmra.mxu0 %v189
    %v289 = vpop.f32.mrf.mxu0
    %v290 = vadd.f32 %v264, %v289
    %291 = vdwg.mxu0
    %v292 = vmax.f32 %v284, 0.0
    %v293 = vmax.f32 %v287, 0.0
    %v294 = vmax.f32 %v290, 0.0
    %v295 = vld [vmem:[%s2] sm:$0xff]
    %v296 = vld [vmem:[%s2 + $0x8] sm:$0xff]
    %v297 = vld [vmem:[%s2 + $0x10] sm:$0xff]
    %v298 = vperm.slane %v295, 0
    %v299 = vlaneseq
    %v300 = vshrl.u32 %v299, 7
    %302 = vset.pattern.permute.xlu0 %v300
    %303 = vperm.xlu0 %302, %v298
    %v304 = vpop.permute.xlu0 %303
    %v305 = vperm.slane %v295, 1
    %v306 = vlaneseq
    %v307 = vshrl.u32 %v306, 7
    %309 = vset.pattern.permute.xlu0 %v307
    %310 = vperm.xlu0 %309, %v305
    %v311 = vpop.permute.xlu0 %310
    %v312 = vperm.slane %v295, 2
    %v313 = vlaneseq
    %v314 = vshrl.u32 %v313, 7
    %316 = vset.pattern.permute.xlu0 %v314
    %317 = vperm.xlu0 %316, %v312
    %v318 = vpop.permute.xlu0 %317
    %v319 = vperm.slane %v295, 3
    %v320 = vlaneseq
    %v321 = vshrl.u32 %v320, 7
    %323 = vset.pattern.permute.xlu0 %v321
    %324 = vperm.xlu0 %323, %v319
    %v325 = vpop.permute.xlu0 %324
    %v326 = vperm.slane %v295, 4
    %v327 = vlaneseq
    %v328 = vshrl.u32 %v327, 7
    %330 = vset.pattern.permute.xlu0 %v328
    %331 = vperm.xlu0 %330, %v326
    %v332 = vpop.permute.xlu0 %331
    %v333 = vperm.slane %v295, 5
    %v334 = vlaneseq
    %v335 = vshrl.u32 %v334, 7
    %337 = vset.pattern.permute.xlu0 %v335
    %338 = vperm.xlu0 %337, %v333
    %v339 = vpop.permute.xlu0 %338
    %v340 = vperm.slane %v295, 6
    %v341 = vlaneseq
    %v342 = vshrl.u32 %v341, 7
    %344 = vset.pattern.permute.xlu0 %v342
    %345 = vperm.xlu0 %344, %v340
    %v346 = vpop.permute.xlu0 %345
    %v347 = vperm.slane %v295, 7
    %v348 = vlaneseq
    %v349 = vshrl.u32 %v348, 7
    %351 = vset.pattern.permute.xlu0 %v349
    %352 = vperm.xlu0 %351, %v347
    %v353 = vpop.permute.xlu0 %352
    %v354 = vperm.slane %v296, 0
    %v355 = vlaneseq
    %v356 = vshrl.u32 %v355, 7
    %358 = vset.pattern.permute.xlu0 %v356
    %359 = vperm.xlu0 %358, %v354
    %v360 = vpop.permute.xlu0 %359
    %v361 = vperm.slane %v296, 1
    %v362 = vlaneseq
    %v363 = vshrl.u32 %v362, 7
    %365 = vset.pattern.permute.xlu0 %v363
    %366 = vperm.xlu0 %365, %v361
    %v367 = vpop.permute.xlu0 %366
    %v368 = vperm.slane %v296, 2
    %v369 = vlaneseq
    %v370 = vshrl.u32 %v369, 7
    %372 = vset.pattern.permute.xlu0 %v370
    %373 = vperm.xlu0 %372, %v368
    %v374 = vpop.permute.xlu0 %373
    %v375 = vperm.slane %v296, 3
    %v376 = vlaneseq
    %v377 = vshrl.u32 %v376, 7
    %379 = vset.pattern.permute.xlu0 %v377
    %380 = vperm.xlu0 %379, %v375
    %v381 = vpop.permute.xlu0 %380
    %v382 = vperm.slane %v296, 4
    %v383 = vlaneseq
    %v384 = vshrl.u32 %v383, 7
    %386 = vset.pattern.permute.xlu0 %v384
    %387 = vperm.xlu0 %386, %v382
    %v388 = vpop.permute.xlu0 %387
    %v389 = vperm.slane %v296, 5
    %v390 = vlaneseq
    %v391 = vshrl.u32 %v390, 7
    %393 = vset.pattern.permute.xlu0 %v391
    %394 = vperm.xlu0 %393, %v389
    %v395 = vpop.permute.xlu0 %394
    %v396 = vperm.slane %v296, 6
    %v397 = vlaneseq
    %v398 = vshrl.u32 %v397, 7
    %400 = vset.pattern.permute.xlu0 %v398
    %401 = vperm.xlu0 %400, %v396
    %v402 = vpop.permute.xlu0 %401
    %v403 = vperm.slane %v296, 7
    %v404 = vlaneseq
    %v405 = vshrl.u32 %v404, 7
    %407 = vset.pattern.permute.xlu0 %v405
    %408 = vperm.xlu0 %407, %v403
    %v409 = vpop.permute.xlu0 %408
    %v410 = vperm.slane %v297, 0
    %v411 = vlaneseq
    %v412 = vshrl.u32 %v411, 7
    %414 = vset.pattern.permute.xlu0 %v412
    %415 = vperm.xlu0 %414, %v410
    %v416 = vpop.permute.xlu0 %415
    %v417 = vperm.slane %v297, 1
    %v418 = vlaneseq
    %v419 = vshrl.u32 %v418, 7
    %421 = vset.pattern.permute.xlu0 %v419
    %422 = vperm.xlu0 %421, %v417
    %v423 = vpop.permute.xlu0 %422
    %v424 = vperm.slane %v297, 2
    %v425 = vlaneseq
    %v426 = vshrl.u32 %v425, 7
    %428 = vset.pattern.permute.xlu0 %v426
    %429 = vperm.xlu0 %428, %v424
    %v430 = vpop.permute.xlu0 %429
    %v431 = vperm.slane %v297, 3
    %v432 = vlaneseq
    %v433 = vshrl.u32 %v432, 7
    %435 = vset.pattern.permute.xlu0 %v433
    %436 = vperm.xlu0 %435, %v431
    %v437 = vpop.permute.xlu0 %436
    %v438 = vperm.slane %v297, 4
    %v439 = vlaneseq
    %v440 = vshrl.u32 %v439, 7
    %442 = vset.pattern.permute.xlu0 %v440
    %443 = vperm.xlu0 %442, %v438
    %v444 = vpop.permute.xlu0 %443
    %v445 = vperm.slane %v297, 5
    %v446 = vlaneseq
    %v447 = vshrl.u32 %v446, 7
    %449 = vset.pattern.permute.xlu0 %v447
    %450 = vperm.xlu0 %449, %v445
    %v451 = vpop.permute.xlu0 %450
    %v452 = vperm.slane %v297, 6
    %v453 = vlaneseq
    %v454 = vshrl.u32 %v453, 7
    %456 = vset.pattern.permute.xlu0 %v454
    %457 = vperm.xlu0 %456, %v452
    %v458 = vpop.permute.xlu0 %457
    %v459 = vperm.slane %v297, 7
    %v460 = vlaneseq
    %v461 = vshrl.u32 %v460, 7
    %463 = vset.pattern.permute.xlu0 %v461
    %464 = vperm.xlu0 %463, %v459
    %v465 = vpop.permute.xlu0 %464
    %vm466 = vcmp.gt.f32.partialorder %v304, 0.0
    %vm467 = vcmp.gt.f32.partialorder %v311, 0.0
    %vm468 = vcmp.gt.f32.partialorder %v318, 0.0
    %vm469 = vcmp.gt.f32.partialorder %v325, 0.0
    %vm470 = vcmp.gt.f32.partialorder %v332, 0.0
    %vm471 = vcmp.gt.f32.partialorder %v339, 0.0
    %vm472 = vcmp.gt.f32.partialorder %v346, 0.0
    %vm473 = vcmp.gt.f32.partialorder %v353, 0.0
    %vm474 = vcmp.gt.f32.partialorder %v360, 0.0
    %vm475 = vcmp.gt.f32.partialorder %v367, 0.0
    %vm476 = vcmp.gt.f32.partialorder %v374, 0.0
    %vm477 = vcmp.gt.f32.partialorder %v381, 0.0
    %vm478 = vcmp.gt.f32.partialorder %v388, 0.0
    %vm479 = vcmp.gt.f32.partialorder %v395, 0.0
    %vm480 = vcmp.gt.f32.partialorder %v402, 0.0
    %vm481 = vcmp.gt.f32.partialorder %v409, 0.0
    %vm482 = vcmp.gt.f32.partialorder %v416, 0.0
    %vm483 = vcmp.gt.f32.partialorder %v423, 0.0
    %vm484 = vcmp.gt.f32.partialorder %v430, 0.0
    %vm485 = vcmp.gt.f32.partialorder %v437, 0.0
    %vm486 = vcmp.gt.f32.partialorder %v444, 0.0
    %vm487 = vcmp.gt.f32.partialorder %v451, 0.0
    %vm488 = vcmp.gt.f32.partialorder %v458, 0.0
    %vm489 = vcmp.gt.f32.partialorder %v465, 0.0
    %v493 = vrot.slane %v292, 1
    %v494 = vrot.slane %v292, 2
    %v495 = vrot.slane %v292, 3
    %v496 = vrot.slane %v292, 4
    %v497 = vrot.slane %v292, 5
    %v498 = vrot.slane %v292, 6
    %v499 = vrot.slane %v292, 7
    %v500 = vrot.slane %v293, 1
    %v501 = vrot.slane %v293, 2
    %v502 = vrot.slane %v293, 3
    %v503 = vrot.slane %v293, 4
    %v504 = vrot.slane %v293, 5
    %v505 = vrot.slane %v293, 6
    %v506 = vrot.slane %v293, 7
    %v507 = vrot.slane %v294, 1
    %v508 = vrot.slane %v294, 2
    %v509 = vrot.slane %v294, 3
    %v510 = vrot.slane %v294, 4
    %v511 = vrot.slane %v294, 5
    %v512 = vrot.slane %v294, 6
    %v513 = vrot.slane %v294, 7
    %v514 = vsel %vm466, 1, 0
    %v515 = vsel %vm467, 1, 0
    %v516 = vsel %vm468, 1, 0
    %v517 = vsel %vm469, 1, 0
    %v518 = vsel %vm470, 1, 0
    %v519 = vsel %vm471, 1, 0
    %v520 = vsel %vm472, 1, 0
    %v521 = vsel %vm473, 1, 0
    %v522 = vsel %vm474, 1, 0
    %v523 = vsel %vm475, 1, 0
    %v524 = vsel %vm476, 1, 0
    %v525 = vsel %vm477, 1, 0
    %v526 = vsel %vm478, 1, 0
    %v527 = vsel %vm479, 1, 0
    %v528 = vsel %vm480, 1, 0
    %v529 = vsel %vm481, 1, 0
    %v530 = vsel %vm482, 1, 0
    %v531 = vsel %vm483, 1, 0
    %v532 = vsel %vm484, 1, 0
    %v533 = vsel %vm485, 1, 0
    %v534 = vsel %vm486, 1, 0
    %v535 = vsel %vm487, 1, 0
    %v536 = vsel %vm488, 1, 0
    %v537 = vsel %vm489, 1, 0
    %vm538 = vcmp.eq.s32.totalorder %v514, 1
    %vm539 = vcmp.eq.s32.totalorder %v515, 1
    %vm540 = vcmp.eq.s32.totalorder %v516, 1
    %vm541 = vcmp.eq.s32.totalorder %v517, 1
    %vm542 = vcmp.eq.s32.totalorder %v518, 1
    %vm543 = vcmp.eq.s32.totalorder %v519, 1
    %vm544 = vcmp.eq.s32.totalorder %v520, 1
    %vm545 = vcmp.eq.s32.totalorder %v521, 1
    %vm546 = vcmp.eq.s32.totalorder %v522, 1
    %vm547 = vcmp.eq.s32.totalorder %v523, 1
    %vm548 = vcmp.eq.s32.totalorder %v524, 1
    %vm549 = vcmp.eq.s32.totalorder %v525, 1
    %vm550 = vcmp.eq.s32.totalorder %v526, 1
    %vm551 = vcmp.eq.s32.totalorder %v527, 1
    %vm552 = vcmp.eq.s32.totalorder %v528, 1
    %vm553 = vcmp.eq.s32.totalorder %v529, 1
    %vm554 = vcmp.eq.s32.totalorder %v530, 1
    %vm555 = vcmp.eq.s32.totalorder %v531, 1
    %vm556 = vcmp.eq.s32.totalorder %v532, 1
    %vm557 = vcmp.eq.s32.totalorder %v533, 1
    %vm558 = vcmp.eq.s32.totalorder %v534, 1
    %vm559 = vcmp.eq.s32.totalorder %v535, 1
    %vm560 = vcmp.eq.s32.totalorder %v536, 1
    %vm561 = vcmp.eq.s32.totalorder %v537, 1
    %v562 = vperm.slane %v292, 0
    %v563 = vperm.slane %v493, 0
    %v564 = vperm.slane %v494, 0
    %v565 = vperm.slane %v495, 0
    %v566 = vperm.slane %v496, 0
    %v567 = vperm.slane %v497, 0
    %v568 = vperm.slane %v498, 0
    %v569 = vperm.slane %v499, 0
    %v570 = vperm.slane %v293, 0
    %v571 = vperm.slane %v500, 0
    %v572 = vperm.slane %v501, 0
    %v573 = vperm.slane %v502, 0
    %v574 = vperm.slane %v503, 0
    %v575 = vperm.slane %v504, 0
    %v576 = vperm.slane %v505, 0
    %v577 = vperm.slane %v506, 0
    %v578 = vperm.slane %v294, 0
    %v579 = vperm.slane %v507, 0
    %v580 = vperm.slane %v508, 0
    %v581 = vperm.slane %v509, 0
    %v582 = vperm.slane %v510, 0
    %v583 = vperm.slane %v511, 0
    %v584 = vperm.slane %v512, 0
    %v585 = vperm.slane %v513, 0
    %v610 = vsel %vm538, %v562, -1e+30
    %v611 = vsel %vm539, %v563, -1e+30
    %v612 = vsel %vm540, %v564, -1e+30
    %v613 = vsel %vm541, %v565, -1e+30
    %v614 = vsel %vm542, %v566, -1e+30
    %v615 = vsel %vm543, %v567, -1e+30
    %v616 = vsel %vm544, %v568, -1e+30
    %v617 = vsel %vm545, %v569, -1e+30
    %v618 = vsel %vm546, %v570, -1e+30
    %v619 = vsel %vm547, %v571, -1e+30
    %v620 = vsel %vm548, %v572, -1e+30
    %v621 = vsel %vm549, %v573, -1e+30
    %v622 = vsel %vm550, %v574, -1e+30
    %v623 = vsel %vm551, %v575, -1e+30
    %v624 = vsel %vm552, %v576, -1e+30
    %v625 = vsel %vm553, %v577, -1e+30
    %v626 = vsel %vm554, %v578, -1e+30
    %v627 = vsel %vm555, %v579, -1e+30
    %v628 = vsel %vm556, %v580, -1e+30
    %v629 = vsel %vm557, %v581, -1e+30
    %v630 = vsel %vm558, %v582, -1e+30
    %v631 = vsel %vm559, %v583, -1e+30
    %v632 = vsel %vm560, %v584, -1e+30
    %v633 = vsel %vm561, %v585, -1e+30
    %v634 = vmax.f32 %v610, %v614
    %v635 = vmax.f32 %v611, %v615
    %v636 = vmax.f32 %v612, %v616
    %v637 = vmax.f32 %v613, %v617
    %v638 = vmax.f32 %v634, %v618
    %v639 = vmax.f32 %v635, %v619
    %v640 = vmax.f32 %v636, %v620
    %v641 = vmax.f32 %v637, %v621
    %v642 = vmax.f32 %v638, %v622
    %v643 = vmax.f32 %v639, %v623
    %v644 = vmax.f32 %v640, %v624
    %v645 = vmax.f32 %v641, %v625
    %v646 = vmax.f32 %v642, %v626
    %v647 = vmax.f32 %v643, %v627
    %v648 = vmax.f32 %v644, %v628
    %v649 = vmax.f32 %v645, %v629
    %v650 = vmax.f32 %v646, %v630
    %v651 = vmax.f32 %v647, %v631
    %v652 = vmax.f32 %v648, %v632
    %v653 = vmax.f32 %v649, %v633
    %v654 = vmax.f32 %v650, %v651
    %v655 = vmax.f32 %v652, %v653
    %v656 = vmax.f32 %v654, %v655
    %v657 = vld [vmem:[#allocation8] sm:$0xff]
    %v658 = vld [vmem:[#allocation8 + $0x8] sm:$0xff]
    %v659 = vld [vmem:[#allocation8 + $0x10] sm:$0xff]
    %v660 = vld [vmem:[#allocation8 + $0x18] sm:$0xff]
    %v661 = vld [vmem:[#allocation8 + $0x20] sm:$0xff]
    %v662 = vld [vmem:[#allocation8 + $0x28] sm:$0xff]
    %v663 = vld [vmem:[#allocation8 + $0x30] sm:$0xff]
    %v664 = vld [vmem:[#allocation8 + $0x38] sm:$0xff]
    %v665 = vld [vmem:[#allocation8 + $0x40] sm:$0xff]
    %v666 = vld [vmem:[#allocation8 + $0x48] sm:$0xff]
    %v667 = vld [vmem:[#allocation8 + $0x50] sm:$0xff]
    %v668 = vld [vmem:[#allocation8 + $0x58] sm:$0xff]
    %v669 = vld [vmem:[#allocation8 + $0x60] sm:$0xff]
    %v670 = vld [vmem:[#allocation8 + $0x68] sm:$0xff]
    %v671 = vld [vmem:[#allocation8 + $0x70] sm:$0xff]
    %v672 = vld [vmem:[#allocation8 + $0x78] sm:$0xff]
    %v673 = vld [vmem:[%s8] sm:$0x1]
    %v674 = vld [vmem:[%s9] sm:$0x1]
    %v675 = vld [vmem:[%s10] sm:$0x1]
    %v677 = vperm.slane %v673, 0
    %679 = vmatpush.msra.mxu0 %v672
    %680 = vmatpush.msra.mxu0 %v671
    %681 = vmatpush.msra.mxu0 %v670
    %682 = vmatpush.msra.mxu0 %v669
    %683 = vmatpush.msra.mxu0 %v668
    %684 = vmatpush.msra.mxu0 %v667
    %685 = vmatpush.msra.mxu0 %v666
    %686 = vmatpush.msra.mxu0 %v665
    %687 = vmatpush.msra.mxu0 %v664
    %688 = vmatpush.msra.mxu0 %v663
    %689 = vmatpush.msra.mxu0 %v662
    %690 = vmatpush.msra.mxu0 %v661
    %691 = vmatpush.msra.mxu0 %v660
    %692 = vmatpush.msra.mxu0 %v659
    %693 = vmatpush.msra.mxu0 %v658
    %694 = vmatpush.msra.mxu0 %v657
    %695 = vmatmul.f32.gmra.mxu0 %v656
    %v696 = vpop.f32.mrf.mxu0
    %v697 = vadd.f32 %v677, %v696
    %698 = vdwg.mxu0
    %v699 = vmax.f32 %v697, 0.0
    %v701 = vperm.slane %v674, 0
    %v703 = vmul.f32 %v699, %v701
    %v705 = vperm.slane %v675, 0
    %v707 = vadd.f32 %v703, %v705
    %v708 = vld [vmem:[#allocation10] sm:$0xff]
    %v709 = vld [vmem:[#allocation10 + $0x8] sm:$0xff]
    %v710 = vld [vmem:[#allocation10 + $0x10] sm:$0xff]
    %v711 = vld [vmem:[#allocation10 + $0x18] sm:$0xff]
    %v712 = vld [vmem:[#allocation10 + $0x20] sm:$0xff]
    %v713 = vld [vmem:[#allocation10 + $0x28] sm:$0xff]
    %v714 = vld [vmem:[#allocation10 + $0x30] sm:$0xff]
    %v715 = vld [vmem:[#allocation10 + $0x38] sm:$0xff]
    %v716 = vld [vmem:[#allocation10 + $0x40] sm:$0xff]
    %v717 = vld [vmem:[#allocation10 + $0x48] sm:$0xff]
    %v718 = vld [vmem:[#allocation10 + $0x50] sm:$0xff]
    %v719 = vld [vmem:[#allocation10 + $0x58] sm:$0xff]
    %v720 = vld [vmem:[#allocation10 + $0x60] sm:$0xff]
    %v721 = vld [vmem:[#allocation10 + $0x68] sm:$0xff]
    %v722 = vld [vmem:[#allocation10 + $0x70] sm:$0xff]
    %v723 = vld [vmem:[#allocation10 + $0x78] sm:$0xff]
    %v724 = vld [vmem:[%s12] sm:$0x1]
    %v725 = vld [vmem:[%s13] sm:$0x1]
    %v726 = vld [vmem:[%s14] sm:$0x1]
    %v728 = vperm.slane %v724, 0
    %730 = vmatpush.msra.mxu0 %v723
    %731 = vmatpush.msra.mxu0 %v722
    %732 = vmatpush.msra.mxu0 %v721
    %733 = vmatpush.msra.mxu0 %v720
    %734 = vmatpush.msra.mxu0 %v719
    %735 = vmatpush.msra.mxu0 %v718
    %736 = vmatpush.msra.mxu0 %v717
    %737 = vmatpush.msra.mxu0 %v716
    %738 = vmatpush.msra.mxu0 %v715
    %739 = vmatpush.msra.mxu0 %v714
    %740 = vmatpush.msra.mxu0 %v713
    %741 = vmatpush.msra.mxu0 %v712
    %742 = vmatpush.msra.mxu0 %v711
    %743 = vmatpush.msra.mxu0 %v710
    %744 = vmatpush.msra.mxu0 %v709
    %745 = vmatpush.msra.mxu0 %v708
    %746 = vmatmul.f32.gmra.mxu0 %v707
    %v747 = vpop.f32.mrf.mxu0
    %v748 = vadd.f32 %v728, %v747
    %749 = vdwg.mxu0
    %v750 = vmax.f32 %v748, 0.0
    %v752 = vperm.slane %v725, 0
    %v754 = vmul.f32 %v750, %v752
    %v756 = vperm.slane %v726, 0
    %v758 = vadd.f32 %v754, %v756
    %759 = vst [vmem:[#allocation11] sm:$0xff] %v758
    // Predicated region
    $region82: #{tpu_custom_call.1} parent=1 // pred_check
      _
    $region83: #{tpu_custom_call.1} parent=1 // pred_check_branch
      %761 = sbr.rel (0) target = $region85
    $region84: #{tpu_custom_call.1} parent=1 // pred_region
      %763 = vsyncadd [#allocation4], 0
      %s765 = sshll.u32 [#allocation11], 4
      %s766 = int_to_ptr.vmem [resolvable:$true] %s765
      %s767 = sshll.u32 %s15, 4
      %s768 = int_to_ptr.hbm [resolvable:$true] %s767
      %770 = dma.vmem_to_hbm [thread:$0]  %s766, 128, %s768, [#allocation4]
    $region85: #{tpu_custom_call.1} parent=1 // pred_fallthru
      _
    // Predicated region
    $region86: #{tpu_custom_call.1} parent=1 // pred_check
      _
    $region87: #{tpu_custom_call.1} parent=1 // pred_check_branch
      %772 = sbr.rel (0) target = $region89
    $region88: #{tpu_custom_call.1} parent=1 // pred_region
      %774 = dma.done [#allocation4], 128
    $region89: #{tpu_custom_call.1} parent=1 // pred_fallthru
      _
    %775 = vsyncpa [#allocation3], 1
    %776 = vsyncpa [#allocation6], 1
    %777 = vsyncpa [#allocation9], 1
    %778 = vsyncpa [#allocation4], 1

</llo_original>
